<compile_context>
chip_gen: v6e
topology: v6e:2x2x1
jax: 0.10.0
libtpu: 0.0.40
codegen_flags: <defaults>
</compile_context>

<pallas_src>
import jax
import jax.numpy as jnp
from jax.experimental import pallas as pl
from jax.experimental.pallas import tpu as pltpu

N_HIDDEN = 512


def _round_up(x, m):
    return ((x + m - 1) // m) * m


def _layer1_kernel(z_ref, w1_ref, b1_ref, h_ref):
    # z_ref:  [tb, n_latent]   bf16
    # w1_ref: [n_latent, 512]  bf16  (resident across the whole grid)
    # b1_ref: [1, 512]         f32
    # h_ref:  [tb, 512]        bf16
    acc = jnp.dot(z_ref[...], w1_ref[...], preferred_element_type=jnp.float32)
    h_ref[...] = jnp.maximum(acc + b1_ref[...], 0.0).astype(h_ref.dtype)


def _layer2_kernel(h_ref, w2_ref, b2_ref, o_ref):
    # h_ref:  [tb, 512]   bf16
    # w2_ref: [512, tn]   bf16  (streamed; each column tile read exactly once)
    # b2_ref: [1, tn]     f32
    # o_ref:  [tb, tn]    f32 (or bf16)
    acc = jnp.dot(h_ref[...], w2_ref[...], preferred_element_type=jnp.float32)
    o_ref[...] = (acc + b2_ref[...]).astype(o_ref.dtype)


def generator_forward(z, w1_t, b1, w2_t, b2, *, out_dtype=jnp.float32):
    """z: [B, n_latent] f32.  w1_t: [n_latent, 512] bf16, b1: [1, 512] f32,
    w2_t: [512, n_input] bf16, b2: [1, n_input] f32.  Returns [B, n_input]."""
    B, n_latent = z.shape
    n_hidden, n_input = w2_t.shape
    assert n_hidden == N_HIDDEN

    # ---- Tiling ------------------------------------------------------------
    tile_b = min(256, _round_up(max(B, 1), 8))          # 128-256 sweet spot
    B_pad = _round_up(B, tile_b)
    tile_n = min(1024, _round_up(n_input, 128))          # lane-dense columns
    n_pad = _round_up(n_input, tile_n)

    n_batch_tiles = B_pad // tile_b
    n_col_tiles = n_pad // tile_n
    assert n_batch_tiles * tile_b == B_pad
    assert n_col_tiles * tile_n == n_pad

    # ---- Wrapper-side padding (sliced off at the end) -----------------------
    zb = z.astype(jnp.bfloat16)
    if B_pad != B:
        zb = jnp.pad(zb, ((0, B_pad - B), (0, 0)))
    if n_pad != n_input:
        w2_t = jnp.pad(w2_t, ((0, 0), (0, n_pad - n_input)))
        b2 = jnp.pad(b2, ((0, 0), (0, n_pad - n_input)))

    # ---- Layer 1: h = relu(z @ W1.T + b1), computed once per batch tile -----
    h = pl.pallas_call(
        _layer1_kernel,
        out_shape=jax.ShapeDtypeStruct((B_pad, n_hidden), jnp.bfloat16),
        grid_spec=pltpu.PrefetchScalarGridSpec(
            num_scalar_prefetch=0,
            grid=(n_batch_tiles,),
            in_specs=[
                pl.BlockSpec((tile_b, n_latent), lambda i: (i, 0)),     # z
                pl.BlockSpec((n_latent, n_hidden), lambda i: (0, 0)),   # W1 (resident)
                pl.BlockSpec((1, n_hidden), lambda i: (0, 0)),          # b1 (resident)
            ],
            out_specs=pl.BlockSpec((tile_b, n_hidden), lambda i: (i, 0)),
        ),
        compiler_params=pltpu.CompilerParams(dimension_semantics=("parallel",)),
    )(zb, w1_t, b1)

    # ---- Layer 2: x = h @ W2.T + b2, W2 streamed from HBM exactly once ------
    w2_spec_kwargs = {}
    if n_batch_tiles == 1 and n_col_tiles > 1:
        # Only one grid step per column tile: deepen the W2 pipeline so the
        # next column tile's DMA stays ahead of compute.
        w2_spec_kwargs["pipeline_mode"] = pl.Buffered(3)

    out = pl.pallas_call(
        _layer2_kernel,
        out_shape=jax.ShapeDtypeStruct((B_pad, n_pad), out_dtype),
        grid_spec=pltpu.PrefetchScalarGridSpec(
            num_scalar_prefetch=0,
            grid=(n_col_tiles, n_batch_tiles),   # columns outer, batch inner
            in_specs=[
                pl.BlockSpec((tile_b, n_hidden), lambda j, i: (i, 0)),   # h
                pl.BlockSpec((n_hidden, tile_n), lambda j, i: (0, j),    # W2 col tile
                             **w2_spec_kwargs),
                pl.BlockSpec((1, tile_n), lambda j, i: (0, j)),          # b2 col tile
            ],
            out_specs=pl.BlockSpec((tile_b, tile_n), lambda j, i: (i, j)),
        ),
        compiler_params=pltpu.CompilerParams(
            # Column axis is the megacore-splittable one: on v7x each TC then
            # reads only its own W2 columns (never a chip-wide double read).
            dimension_semantics=("parallel", "arbitrary"),
        ),
    )(h, w2_t, b2)

    return out[:B, :n_input]


def init_params(key, n_input, n_latent, n_hidden=N_HIDDEN):
    """Matches generator.__init__: W_1 [512, n_latent], b_1 [512],
    W_2 [n_input, 512], b_2 [n_input], all N(0, 0.1)."""
    k1, k2, k3, k4 = jax.random.split(key, 4)
    w1 = 0.1 * jax.random.normal(k1, (n_hidden, n_latent), jnp.float32)
    b1 = 0.1 * jax.random.normal(k2, (n_hidden,), jnp.float32)
    w2 = 0.1 * jax.random.normal(k3, (n_input, n_hidden), jnp.float32)
    b2 = 0.1 * jax.random.normal(k4, (n_input,), jnp.float32)
    # Kernel layout: pre-transposed bf16 weights, [1, F] f32 biases.
    w1_t = w1.T.astype(jnp.bfloat16)        # [n_latent, n_hidden]
    b1_r = b1.reshape(1, n_hidden)          # [1, n_hidden] f32
    w2_t = w2.T.astype(jnp.bfloat16)        # [n_hidden, n_input]
    b2_r = b2.reshape(1, n_input)           # [1, n_input] f32
    return w1_t, b1_r, w2_t, b2_r


def reference_forward(z, w1_t, b1, w2_t, b2):
    """Same precision path (bf16 operands, f32 accumulation) computed via XLA."""
    zb = z.astype(jnp.bfloat16)
    h = jnp.dot(zb, w1_t, preferred_element_type=jnp.float32) + b1
    h = jnp.maximum(h, 0.0).astype(jnp.bfloat16)
    return jnp.dot(h, w2_t, preferred_element_type=jnp.float32) + b2


if __name__ == "__main__":
    # Small config matching the module, plus one that exercises padding,
    # multiple column tiles, and the deepened W2 pipeline path.
    configs = [
        dict(n_input=32, n_latent=8, batch=16),
        dict(n_input=2304, n_latent=16, batch=12),
    ]
    key = jax.random.PRNGKey(0)
    for cfg in configs:
        key, kz, kp = jax.random.split(key, 3)
        z = jax.random.normal(kz, (cfg["batch"], cfg["n_latent"]), jnp.float32)
        w1_t, b1, w2_t, b2 = init_params(kp, cfg["n_input"], cfg["n_latent"])

        out = generator_forward(z, w1_t, b1, w2_t, b2)
        out = jax.block_until_ready(out)

        ref = reference_forward(z, w1_t, b1, w2_t, b2)
        assert out.shape == (cfg["batch"], cfg["n_input"])
        assert jnp.allclose(out, ref, atol=2e-2, rtol=2e-2), "mismatch vs reference"

    print("KERNEL_OK")
</pallas_src>

<mosaic_0001>
module attributes {stable_mosaic.version = 11 : i64} {
  func.func @_layer1_kernel(%arg0: i32, %arg1: memref<16x8xbf16, #tpu.memory_space<vmem>>, %arg2: memref<8x512xbf16, #tpu.memory_space<vmem>>, %arg3: memref<1x512xf32, #tpu.memory_space<vmem>>, %arg4: memref<16x512xbf16, #tpu.memory_space<vmem>>) attributes {dimension_semantics = [#tpu.dimension_semantics<parallel>], iteration_bounds = array<i64: 1>, scalar_prefetch = 0 : i64, scratch_operands = 0 : i64, tpu.core_type = #tpu.core_type<tc>, window_params = [{transform_indices = @transform_0, window_bounds = array<i64: 16, 8>}, {pipeline_mode = #tpu.pipeline_mode<synchronous>, transform_indices = @transform_1, window_bounds = array<i64: 8, 512>}, {pipeline_mode = #tpu.pipeline_mode<synchronous>, transform_indices = @transform_2, window_bounds = array<i64: 1, 512>}, {transform_indices = @transform_3, window_bounds = array<i64: 16, 512>}]} {
    %c0 = arith.constant 0 : index
    %c0_0 = arith.constant 0 : index
    %0 = vector.load %arg1[%c0, %c0_0] : memref<16x8xbf16, #tpu.memory_space<vmem>>, vector<16x8xbf16>
    %c0_1 = arith.constant 0 : index
    %c0_2 = arith.constant 0 : index
    %1 = vector.load %arg2[%c0_1, %c0_2] : memref<8x512xbf16, #tpu.memory_space<vmem>>, vector<8x512xbf16>
    %cst = arith.constant dense<0.000000e+00> : vector<16x512xf32>
    %2 = tpu.matmul %0, %1, %cst {dimension_numbers = #tpu.dot_dimension_numbers<[1], [0], [0], [1], [0, 0, 1, 1], [], []>} : vector<16x8xbf16>, vector<8x512xbf16>, vector<16x512xf32> -> vector<16x512xf32>
    %c0_3 = arith.constant 0 : index
    %c0_4 = arith.constant 0 : index
    %3 = vector.load %arg3[%c0_3, %c0_4] : memref<1x512xf32, #tpu.memory_space<vmem>>, vector<1x512xf32>
    %4 = vector.broadcast %3 : vector<1x512xf32> to vector<16x512xf32>
    %5 = arith.addf %2, %4 : vector<16x512xf32>
    %cst_5 = arith.constant 0.000000e+00 : f32
    %6 = vector.broadcast %cst_5 : f32 to vector<16x512xf32>
    %7 = arith.maximumf %5, %6 : vector<16x512xf32>
    %8 = arith.truncf %7 : vector<16x512xf32> to vector<16x512xbf16>
    %c0_6 = arith.constant 0 : index
    %c0_7 = arith.constant 0 : index
    %9 = vector.load %arg4[%c0_6, %c0_7] : memref<16x512xbf16, #tpu.memory_space<vmem>>, vector<16x512xbf16>
    tpu.vector_store %arg4[%c0_6, %c0_7], %8 {strides = array<i32>} : memref<16x512xbf16, #tpu.memory_space<vmem>>, vector<16x512xbf16>,
    return
  }
  func.func @transform_0(%arg0: i32) -> (i32, i32) {
    %c0_i32 = arith.constant 0 : i32
    %c0_i32_0 = arith.constant 0 : i32
    return %arg0, %c0_i32 : i32, i32
  }
  func.func @transform_1(%arg0: i32) -> (i32, i32) {
    %c0_i32 = arith.constant 0 : i32
    %c0_i32_0 = arith.constant 0 : i32
    %c0_i32_1 = arith.constant 0 : i32
    return %c0_i32, %c0_i32_0 : i32, i32
  }
  func.func @transform_2(%arg0: i32) -> (i32, i32) {
    %c0_i32 = arith.constant 0 : i32
    %c0_i32_0 = arith.constant 0 : i32
    %c0_i32_1 = arith.constant 0 : i32
    return %c0_i32, %c0_i32_0 : i32, i32
  }
  func.func @transform_3(%arg0: i32) -> (i32, i32) {
    %c0_i32 = arith.constant 0 : i32
    %c0_i32_0 = arith.constant 0 : i32
    return %arg0, %c0_i32 : i32, i32
  }
}

</mosaic_0001>

<llo_original>
// kernel: tpu_custom_call.1
$region0: #{tpu_custom_call.1}
  #allocation0 [shape = 'u32[]', space=smem, size = 0x4, offset = 0x4, fixed_abs, tag = 'smem constant byte address 0x4 - core index']
  #allocation1 [shape = 'u32[144,128]{1,0:T(1,128)}', space=vmem, size = 0x12000, scoped, tag = 'internal scratch']
  %s0 = inlined_call_operand.vmem [shape: bf16[16,8], index: 0, kind: input, shape index: {}]
  %s1 = inlined_call_operand.hbm [shape: bf16[8,512], index: 1, kind: input, shape index: {}]
  %s2 = inlined_call_operand.vmem [shape: f32[1,512], index: 2, kind: input, shape index: {}]
  %s3 = inlined_call_operand.hbm [shape: bf16[16,512], index: 3, kind: output, shape index: {}]
  %s4 = sld [smem:[#allocation0]]
  $region26: #{tpu_custom_call.1} parent=0
    _
  %s6 = ssub.s32 1, %s4
  %s7 = scalar_select 0, %s6, %s4
  $region1: #{tpu_custom_call.1} parent=0
    #allocation2 [shape = 'u8[8192]{0}', space=vmem, size = 0x2000, scoped, tag = 'input window, operand 1, single buffered']
    #allocation3 [shape = 's32[1]{0}', space=sflag, size = 0x4, scoped, tag = 'scoped memory for tpu_custom_call.1']
    #allocation4 [shape = 's32[1]{0}', space=sflag, size = 0x4, scoped, tag = 'scoped memory for tpu_custom_call.1']
    #allocation5 [shape = 'u8[16384]{0}', space=vmem, size = 0x4000, scoped, tag = 'output window, operand 0, single buffered']
    %8 = vsyncpa [#allocation3], 0
    %9 = vsyncpa [#allocation4], 0
    // Predicated region
    $region2: #{tpu_custom_call.1} parent=1 // pred_check
      _
    $region3: #{tpu_custom_call.1} parent=1 // pred_check_branch
      %11 = sbr.rel (0) target = $region5
    $region4: #{tpu_custom_call.1} parent=1 // pred_region
      _
    $region5: #{tpu_custom_call.1} parent=1 // pred_fallthru
      _
    // Predicated region
    $region6: #{tpu_custom_call.1} parent=1 // pred_check
      _
    $region7: #{tpu_custom_call.1} parent=1 // pred_check_branch
      %13 = sbr.rel (0) target = $region9
    $region8: #{tpu_custom_call.1} parent=1 // pred_region
      %s15 = ssub.s32 256, 256
      %16 = vsyncadd [#allocation3], %s15
      %s18 = sshll.u32 [#allocation2], 4
      %s19 = int_to_ptr.vmem [resolvable:$true] %s18
      %21 = dma.hbm_to_vmem [thread:$0]  %s1, 256, %s19, [#allocation3]
    $region9: #{tpu_custom_call.1} parent=1 // pred_fallthru
      _
    // Predicated region
    $region10: #{tpu_custom_call.1} parent=1 // pred_check
      _
    $region11: #{tpu_custom_call.1} parent=1 // pred_check_branch
      %23 = sbr.rel (0) target = $region13
    $region12: #{tpu_custom_call.1} parent=1 // pred_region
      _
    $region13: #{tpu_custom_call.1} parent=1 // pred_fallthru
      _
    // Predicated region
    $region14: #{tpu_custom_call.1} parent=1 // pred_check
      _
    $region15: #{tpu_custom_call.1} parent=1 // pred_check_branch
      %25 = sbr.rel (0) target = $region17
    $region16: #{tpu_custom_call.1} parent=1 // pred_region
      %26 = dma.done [#allocation3], 256
    $region17: #{tpu_custom_call.1} parent=1 // pred_fallthru
      _
    %v28 = vld [vmem:[%s0] sm:$0xf]
    %v29 = vld [vmem:[%s0 + $0x4] sm:$0xf]
    %v30 = vld [vmem:[#allocation2] sm:$0xff]
    %v31 = vld [vmem:[#allocation2 + $0x8] sm:$0xff]
    %v32 = vld [vmem:[%s2] sm:$0xf]
    %v34 = vlaneseq
    %v35 = vshrl.u32 %v34, 7
    %v36 = vsub.s32 0, %v35
    %v37 = vrot.slane %v32, %v36
    %v38 = vlaneseq
    %v39 = vshrl.u32 %v38, 7
    %v40 = vsub.s32 1, %v39
    %v41 = vrot.slane %v32, %v40
    %v42 = vlaneseq
    %v43 = vshrl.u32 %v42, 7
    %v44 = vsub.s32 2, %v43
    %v45 = vrot.slane %v32, %v44
    %v46 = vlaneseq
    %v47 = vshrl.u32 %v46, 7
    %v48 = vsub.s32 3, %v47
    %v49 = vrot.slane %v32, %v48
    %v56 = vunpack.c.l.b16 %v28
    %v57 = vunpack.c.l.b16 %v29
    %v58 = vpack.c.b16 %v57, %v56
    %v61 = vunpack.c.l.b16 %v30
    %v62 = vunpack.c.h.b16 %v30
    %v63 = vunpack.c.l.b16 %v31
    %v64 = vunpack.c.h.b16 %v31
    %v65 = vpack.c.b16 %v61, %v61
    %v66 = vpack.c.b16 %v62, %v62
    %v67 = vpack.c.b16 %v63, %v63
    %v68 = vpack.c.b16 %v64, %v64
    %vm69 = vcmask 64512
    %v71 = vsel %vm69, %v58, 0
    %vm73 = vcmask 1043456
    %v75 = vsel %vm73, %v65, 0
    %v78 = vsel %vm73, %v66, 0
    %v81 = vsel %vm73, %v67, 0
    %v84 = vsel %vm73, %v68, 0
    %86 = vmatprep.subr.bf16.mxu0 0
    %87 = vmatpush1.bf16.msra.mxu0 0
    %88 = vmatprep.subr.bf16.mxu0 0
    %89 = vmatpush1.bf16.msra.mxu0 0
    %90 = vmatprep.subr.bf16.mxu0 0
    %91 = vmatpush1.bf16.msra.mxu0 0
    %92 = vmatprep.subr.bf16.mxu0 0
    %93 = vmatpush1.bf16.msra.mxu0 0
    %94 = vmatprep.subr.bf16.mxu0 0
    %95 = vmatpush1.bf16.msra.mxu0 0
    %96 = vmatprep.subr.bf16.mxu0 0
    %97 = vmatpush1.bf16.msra.mxu0 0
    %98 = vmatprep.subr.bf16.mxu0 0
    %99 = vmatpush1.bf16.msra.mxu0 0
    %100 = vmatprep.subr.bf16.mxu0 %v78
    %101 = vmatpush1.bf16.msra.mxu0 %v75
    %102 = vmatprep.subr.bf16.mxu0 0
    %103 = vmatpush2.bf16.msra.mxu0 0
    %104 = vmatprep.subr.bf16.mxu0 0
    %105 = vmatpush2.bf16.msra.mxu0 0
    %106 = vmatprep.subr.bf16.mxu0 0
    %107 = vmatpush2.bf16.msra.mxu0 0
    %108 = vmatprep.subr.bf16.mxu0 0
    %109 = vmatpush2.bf16.msra.mxu0 0
    %110 = vmatprep.subr.bf16.mxu0 0
    %111 = vmatpush2.bf16.msra.mxu0 0
    %112 = vmatprep.subr.bf16.mxu0 0
    %113 = vmatpush2.bf16.msra.mxu0 0
    %114 = vmatprep.subr.bf16.mxu0 0
    %115 = vmatpush2.bf16.msra.mxu0 0
    %116 = vmatprep.subr.bf16.mxu0 0
    %117 = vmatpush2.bf16.msra.mxu0 0
    %118 = vmatprep.mubr.bf16.mxu0 0
    %119 = vmatmul.mubr.bf16.gmra.mxu0 %v71
    %v120 = vpop.f32.mrf.mxu0
    %v121 = vadd.f32 %v37, %v120
    %v122 = vpop.f32.mrf.mxu0
    %v123 = vadd.f32 %v41, %v122
    %v124 = vpop.f32.mrf.mxu0
    %v125 = vadd.f32 %v37, %v124
    %v126 = vpop.f32.mrf.mxu0
    %v127 = vadd.f32 %v41, %v126
    %128 = vdwg.mxu0
    %129 = vmatprep.subr.bf16.mxu0 0
    %130 = vmatpush1.bf16.msra.mxu0 0
    %131 = vmatprep.subr.bf16.mxu0 0
    %132 = vmatpush1.bf16.msra.mxu0 0
    %133 = vmatprep.subr.bf16.mxu0 0
    %134 = vmatpush1.bf16.msra.mxu0 0
    %135 = vmatprep.subr.bf16.mxu0 0
    %136 = vmatpush1.bf16.msra.mxu0 0
    %137 = vmatprep.subr.bf16.mxu0 0
    %138 = vmatpush1.bf16.msra.mxu0 0
    %139 = vmatprep.subr.bf16.mxu0 0
    %140 = vmatpush1.bf16.msra.mxu0 0
    %141 = vmatprep.subr.bf16.mxu0 0
    %142 = vmatpush1.bf16.msra.mxu0 0
    %143 = vmatprep.subr.bf16.mxu0 %v84
    %144 = vmatpush1.bf16.msra.mxu0 %v81
    %145 = vmatprep.subr.bf16.mxu0 0
    %146 = vmatpush2.bf16.msra.mxu0 0
    %147 = vmatprep.subr.bf16.mxu0 0
    %148 = vmatpush2.bf16.msra.mxu0 0
    %149 = vmatprep.subr.bf16.mxu0 0
    %150 = vmatpush2.bf16.msra.mxu0 0
    %151 = vmatprep.subr.bf16.mxu0 0
    %152 = vmatpush2.bf16.msra.mxu0 0
    %153 = vmatprep.subr.bf16.mxu0 0
    %154 = vmatpush2.bf16.msra.mxu0 0
    %155 = vmatprep.subr.bf16.mxu0 0
    %156 = vmatpush2.bf16.msra.mxu0 0
    %157 = vmatprep.subr.bf16.mxu0 0
    %158 = vmatpush2.bf16.msra.mxu0 0
    %159 = vmatprep.subr.bf16.mxu0 0
    %160 = vmatpush2.bf16.msra.mxu0 0
    %161 = vmatprep.mubr.bf16.mxu0 0
    %162 = vmatmul.mubr.bf16.gmra.mxu0 %v71
    %v163 = vpop.f32.mrf.mxu0
    %v164 = vadd.f32 %v45, %v163
    %v165 = vpop.f32.mrf.mxu0
    %v166 = vadd.f32 %v49, %v165
    %v167 = vpop.f32.mrf.mxu0
    %v168 = vadd.f32 %v45, %v167
    %v169 = vpop.f32.mrf.mxu0
    %v170 = vadd.f32 %v49, %v169
    %171 = vdwg.mxu0
    %v172 = vmax.f32 %v121, 0.0
    %v173 = vmax.f32 %v123, 0.0
    %v174 = vmax.f32 %v164, 0.0
    %v175 = vmax.f32 %v166, 0.0
    %v176 = vmax.f32 %v125, 0.0
    %v177 = vmax.f32 %v127, 0.0
    %v178 = vmax.f32 %v168, 0.0
    %v179 = vmax.f32 %v170, 0.0
    %v180 = vpack.c.bf16 %v176, %v172
    %v181 = vpack.c.bf16 %v177, %v173
    %v182 = vpack.c.bf16 %v178, %v174
    %v183 = vpack.c.bf16 %v179, %v175
    %v188 = vunpack.c.l.b16 %v180
    %v189 = vunpack.c.l.b16 %v181
    %v190 = vunpack.c.l.b16 %v182
    %v191 = vunpack.c.l.b16 %v183
    %v192 = vunpack.c.h.b16 %v180
    %v193 = vunpack.c.h.b16 %v181
    %v194 = vunpack.c.h.b16 %v182
    %v195 = vunpack.c.h.b16 %v183
    %v196 = vpack.c.b16 %v189, %v188
    %v197 = vpack.c.b16 %v191, %v190
    %v198 = vpack.c.b16 %v193, %v192
    %v199 = vpack.c.b16 %v195, %v194
    %204 = vst [vmem:[#allocation5] sm:$0xff] %v196
    %205 = vst [vmem:[#allocation5 + $0x8] sm:$0xff] %v197
    %206 = vst [vmem:[#allocation5 + $0x10] sm:$0xff] %v198
    %207 = vst [vmem:[#allocation5 + $0x18] sm:$0xff] %v199
    // Predicated region
    $region18: #{tpu_custom_call.1} parent=1 // pred_check
      _
    $region19: #{tpu_custom_call.1} parent=1 // pred_check_branch
      %209 = sbr.rel (0) target = $region21
    $region20: #{tpu_custom_call.1} parent=1 // pred_region
      %s211 = ssub.s32 512, 512
      %212 = vsyncadd [#allocation4], %s211
      %s213 = sshll.u32 [#allocation5], 4
      %s214 = int_to_ptr.vmem [resolvable:$true] %s213
      %219 = dma.vmem_to_hbm [thread:$0]  %s214, 512, %s3, [#allocation4], 256, 256, 16
    $region21: #{tpu_custom_call.1} parent=1 // pred_fallthru
      _
    // Predicated region
    $region22: #{tpu_custom_call.1} parent=1 // pred_check
      _
    $region23: #{tpu_custom_call.1} parent=1 // pred_check_branch
      %221 = sbr.rel (0) target = $region25
    $region24: #{tpu_custom_call.1} parent=1 // pred_region
      %222 = dma.done [#allocation4], 512
    $region25: #{tpu_custom_call.1} parent=1 // pred_fallthru
      _
    %223 = vsyncpa [#allocation3], 1
    %224 = vsyncpa [#allocation4], 1

</llo_original>
